<compile_context>
chip_gen: v7x
topology: tpu7x:2x2x1
jax: 0.10.0
libtpu: 0.0.40
codegen_flags: <defaults>
</compile_context>

<pallas_src>
import functools
import math

import jax
import jax.numpy as jnp
from jax.experimental import pallas as pl
from jax.experimental.pallas import tpu as pltpu


def _round_up(x, m):
    return ((x + m - 1) // m) * m


def _detect_buffered():
    """One-time (import-time) check that this jax build accepts pipeline_mode=Buffered."""
    if not hasattr(pl, "Buffered"):
        return False
    try:
        pl.BlockSpec((8, 128), lambda i: (0, 0), pipeline_mode=pl.Buffered(1))
        return True
    except Exception:
        return False


_HAS_BUFFERED = _detect_buffered()


def _default_vmem_limit():
    """~75% of physical VMEM, capped at 100 MiB (=> ~48 MiB on v7x, ~96 MiB on v5e/v6e)."""
    try:
        cap = pltpu.get_tpu_info().vmem_capacity_bytes
    except Exception:
        cap = 64 * 1024 * 1024
    return int(min(100 * 1024 * 1024, cap * 3 // 4))


def _pick_ts(n_images, s, requested=512, min_total_steps=8):
    """Spatial (lane) tile: multiple of 128, shrunk so the grid has enough steps for
    pipeline steady state and megacore splitting (>= ~4 steps per TensorCore)."""
    ts = max(128, min(_round_up(requested, 128), _round_up(s, 128)))
    while ts > 128 and n_images * (_round_up(s, ts) // ts) < min_total_steps:
        ts = max(128, (ts // 2) // 128 * 128)
    return ts


def _ffn_kernel(x_ref, w1_ref, b1_ref, w2_ref, b2_ref, o_ref, acc_ref, *,
                chunk, n_chunks):
    # x_ref: (Cp, ts) bf16       w1_ref: (Hp, Cp) bf16   b1_ref: (Hp, 1) f32
    # w2_ref: (Cp, Hp) bf16      b2_ref: (Cp, 1) f32
    # o_ref: (Cp, ts) out dtype  acc_ref: (Cp, ts) f32 scratch
    x = x_ref[...]

    def hidden_block(start):
        w1c = w1_ref[pl.ds(start, chunk), :]                     # (chunk, Cp) bf16
        b1c = b1_ref[pl.ds(start, chunk), :]                     # (chunk, 1)  f32
        h = jnp.dot(w1c, x, preferred_element_type=jnp.float32) + b1c
        # GELU with 1/sqrt(2) folded into (W1, b1) and sqrt(2)/2 folded into W2:
        # contribution == h * (1 + erf(h))   (exact; erf goes to the EUP slot).
        g = h * (1.0 + jax.lax.erf(h))
        w2c = w2_ref[:, pl.ds(start, chunk)]                     # (Cp, chunk) bf16
        return jnp.dot(w2c, g.astype(w2c.dtype), preferred_element_type=jnp.float32)

    if n_chunks == 1:
        out = hidden_block(0)
    else:
        acc_ref[...] = jnp.zeros_like(acc_ref)

        def body(c, carry):
            start = pl.multiple_of(c * chunk, chunk)
            acc_ref[...] += hidden_block(start)
            return carry

        jax.lax.fori_loop(0, n_chunks, body, 0, unroll=(n_chunks <= 4))
        out = acc_ref[...]

    o_ref[...] = (out + b2_ref[...]).astype(o_ref.dtype)


def ffn_pallas(x, w1, b1, w2, b2, *, ts, chunk, n_chunks, out_dtype,
               vmem_limit_bytes=None):
    """x: (N, Cp, Sp) bf16; w1: (Hp, Cp) bf16; b1: (Hp, 1) f32;
    w2: (Cp, Hp) bf16; b2: (Cp, 1) f32."""
    N, Cp, Sp = x.shape
    Hp = w1.shape[0]
    assert Sp % ts == 0 and ts % 128 == 0 and Hp == n_chunks * chunk

    if vmem_limit_bytes is None:
        vmem_limit_bytes = _default_vmem_limit()

    def const_spec(shape):
        # Grid-invariant operands (constant index_map): one VMEM copy is enough, so
        # request single-buffering when this jax build supports it.
        index_map = lambda n, s: (0,) * len(shape)
        if _HAS_BUFFERED:
            return pl.BlockSpec(shape, index_map, pipeline_mode=pl.Buffered(1))
        return pl.BlockSpec(shape, index_map)

    kernel = functools.partial(_ffn_kernel, chunk=chunk, n_chunks=n_chunks)

    return pl.pallas_call(
        kernel,
        out_shape=jax.ShapeDtypeStruct((N, Cp, Sp), out_dtype),
        grid_spec=pltpu.PrefetchScalarGridSpec(
            num_scalar_prefetch=0,
            grid=(N, Sp // ts),
            in_specs=[
                pl.BlockSpec((None, Cp, ts), lambda n, s: (n, 0, s)),  # x tile
                const_spec((Hp, Cp)),   # W1 (BN1 + 1/sqrt(2) folded)
                const_spec((Hp, 1)),    # b1
                const_spec((Cp, Hp)),   # W2 (BN2 + sqrt(2)/2 folded)
                const_spec((Cp, 1)),    # b2
            ],
            out_specs=pl.BlockSpec((None, Cp, ts), lambda n, s: (n, 0, s)),
            scratch_shapes=[pltpu.VMEM((Cp, ts), jnp.float32)],
        ),
        compiler_params=pltpu.CompilerParams(
            dimension_semantics=("parallel", "parallel"),
            vmem_limit_bytes=vmem_limit_bytes,
        ),
    )(x, w1, b1, w2, b2)


def make_params(key, in_dim):
    """Deterministic synthetic parameters mirroring the PyTorch module shapes."""
    hid = in_dim * 4
    ks = jax.random.split(key, 12)
    p = {}
    # Conv2d(in_dim, 4*in_dim, 1): weight (hid, in_dim, 1, 1) -> (hid, in_dim), bias (hid,)
    p["w1"] = jax.random.normal(ks[0], (hid, in_dim), jnp.float32) * 0.1
    p["c1_b"] = jax.random.normal(ks[1], (hid,), jnp.float32) * 0.1
    # BatchNorm2d(hid)
    p["bn1_g"] = 1.0 + 0.1 * jax.random.normal(ks[2], (hid,), jnp.float32)
    p["bn1_b"] = 0.1 * jax.random.normal(ks[3], (hid,), jnp.float32)
    p["bn1_m"] = 0.1 * jax.random.normal(ks[4], (hid,), jnp.float32)
    p["bn1_v"] = jnp.abs(jax.random.normal(ks[5], (hid,), jnp.float32)) * 0.5 + 0.5
    # Conv2d(4*in_dim, in_dim, 1): weight (in_dim, hid), bias (in_dim,)
    p["w2"] = jax.random.normal(ks[6], (in_dim, hid), jnp.float32) * 0.1
    p["c2_b"] = jax.random.normal(ks[7], (in_dim,), jnp.float32) * 0.1
    # BatchNorm2d(in_dim)
    p["bn2_g"] = 1.0 + 0.1 * jax.random.normal(ks[8], (in_dim,), jnp.float32)
    p["bn2_b"] = 0.1 * jax.random.normal(ks[9], (in_dim,), jnp.float32)
    p["bn2_m"] = 0.1 * jax.random.normal(ks[10], (in_dim,), jnp.float32)
    p["bn2_v"] = jnp.abs(jax.random.normal(ks[11], (in_dim,), jnp.float32)) * 0.5 + 0.5
    return p


def fold_conv_bn(w_oi, conv_b, gamma, beta, mean, var, eps=1e-5):
    """Fold eval-mode BatchNorm into a 1x1 conv. Returns (W [out, in], b [out]) in f32."""
    scale = gamma / jnp.sqrt(var + eps)              # (out,)
    w_eff = w_oi * scale[:, None]                    # (out, in)
    b_eff = (conv_b - mean) * scale + beta           # (out,)
    return w_eff.astype(jnp.float32), b_eff.astype(jnp.float32)


def ffn_forward(x_nchw, params, *, spatial_tile=512, hidden_chunk=512,
                out_dtype=jnp.bfloat16):
    """FFN forward in channel-on-sublane / spatial-on-lane layout. Jittable."""
    N, C, H, W = x_nchw.shape
    w1, b1 = fold_conv_bn(params["w1"], params["c1_b"], params["bn1_g"],
                          params["bn1_b"], params["bn1_m"], params["bn1_v"])
    w2, b2 = fold_conv_bn(params["w2"], params["c2_b"], params["bn2_g"],
                          params["bn2_b"], params["bn2_m"], params["bn2_v"])
    H4 = w1.shape[0]

    # Fold the GELU constants into the weights (exact): with h' = h/sqrt(2),
    # gelu(h) = (sqrt(2)/2) * h' * (1 + erf(h')), so the kernel only does h'*(1+erf(h')).
    inv_sqrt2 = 1.0 / math.sqrt(2.0)
    w1 = w1 * inv_sqrt2
    b1 = b1 * inv_sqrt2
    w2 = w2 * (math.sqrt(2.0) / 2.0)

    # Channel padding only to the 16-element (bf16) sublane granule.
    Cp = _round_up(C, 16)
    if H4 <= hidden_chunk:
        chunk = _round_up(H4, 16)
        Hp = chunk
    else:
        chunk = _round_up(hidden_chunk, 128)  # 128-aligned lane slices of W2
        Hp = _round_up(H4, chunk)
    n_chunks = Hp // chunk

    S = H * W
    ts = _pick_ts(N, S, requested=spatial_tile)
    Sp = _round_up(S, ts)

    # Zero-padding keeps the math exact: zero weight rows/cols, zero bias entries,
    # gelu(0) = 0; padded spatial columns / channel rows are sliced off at the end.
    w1p = jnp.pad(w1, ((0, Hp - H4), (0, Cp - C))).astype(jnp.bfloat16)
    b1p = jnp.pad(b1, (0, Hp - H4)).reshape(Hp, 1).astype(jnp.float32)
    w2p = jnp.pad(w2, ((0, Cp - C), (0, Hp - H4))).astype(jnp.bfloat16)
    b2p = jnp.pad(b2, (0, Cp - C)).reshape(Cp, 1).astype(jnp.float32)

    # NCHW kept as-is (no transposes): each image is (C, H*W); cast to bf16 BEFORE
    # padding so the single pad pass writes bf16.
    x3 = x_nchw.astype(jnp.bfloat16).reshape(N, C, S)
    x_pad = jnp.pad(x3, ((0, 0), (0, Cp - C), (0, Sp - S)))

    out_pad = ffn_pallas(x_pad, w1p, b1p, w2p, b2p, ts=ts, chunk=chunk,
                         n_chunks=n_chunks, out_dtype=out_dtype)
    return out_pad[:, :C, :S].reshape(N, C, H, W)


def ffn_reference(x_nchw, params):
    """Pure-JAX f32 reference with identical (eval-mode BN, exact GELU) semantics."""
    N, C, H, W = x_nchw.shape
    w1, b1 = fold_conv_bn(params["w1"], params["c1_b"], params["bn1_g"],
                          params["bn1_b"], params["bn1_m"], params["bn1_v"])
    w2, b2 = fold_conv_bn(params["w2"], params["c2_b"], params["bn2_g"],
                          params["bn2_b"], params["bn2_m"], params["bn2_v"])
    x = x_nchw.reshape(N, C, H * W)
    h = jnp.einsum("oc,ncs->nos", w1, x) + b1[None, :, None]
    g = 0.5 * h * (1.0 + jax.lax.erf(h / jnp.sqrt(2.0)))
    out = jnp.einsum("co,nos->ncs", w2, g) + b2[None, :, None]
    return out.reshape(N, C, H, W)


if __name__ == "__main__":
    in_dim = 4
    N, H, W = 2, 16, 16   # S = H*W = 256 -> ts=128, grid=(2, 2) = 4 steps
    key = jax.random.PRNGKey(0)
    kx, kp = jax.random.split(key)
    x = jax.random.normal(kx, (N, in_dim, H, W), jnp.float32)
    params = make_params(kp, in_dim)

    fwd = jax.jit(ffn_forward)
    out = jax.block_until_ready(fwd(x, params))
    ref = jax.block_until_ready(ffn_reference(x, params))

    assert out.shape == (N, in_dim, H, W)
    # bf16 MXU operands + bf16 output -> looser tolerance vs. the pure-f32 reference.
    assert jnp.allclose(out.astype(jnp.float32), ref, atol=5e-2, rtol=5e-2), \
        "mismatch vs reference"
    print("KERNEL_OK")
</pallas_src>

<mosaic_0001>
module attributes {stable_mosaic.version = 11 : i64} {
  func.func @_ffn_kernel(%arg0: i32, %arg1: i32, %arg2: memref<1x16x128xbf16, #tpu.memory_space<vmem>>, %arg3: memref<16x16xbf16, #tpu.memory_space<vmem>>, %arg4: memref<16x1xf32, #tpu.memory_space<vmem>>, %arg5: memref<16x16xbf16, #tpu.memory_space<vmem>>, %arg6: memref<16x1xf32, #tpu.memory_space<vmem>>, %arg7: memref<1x16x128xbf16, #tpu.memory_space<vmem>>, %arg8: memref<16x128xf32, #tpu.memory_space<vmem>>) attributes {dimension_semantics = [#tpu.dimension_semantics<parallel>, #tpu.dimension_semantics<parallel>], iteration_bounds = array<i64: 2, 2>, scalar_prefetch = 0 : i64, scratch_operands = 1 : i64, tpu.core_type = #tpu.core_type<tc>, window_params = [{transform_indices = @transform_0, window_bounds = array<i64: 1, 16, 128>}, {pipeline_mode = #tpu.pipeline_mode<synchronous>, transform_indices = @transform_1, window_bounds = array<i64: 16, 16>}, {pipeline_mode = #tpu.pipeline_mode<synchronous>, transform_indices = @transform_2, window_bounds = array<i64: 16, 1>}, {pipeline_mode = #tpu.pipeline_mode<synchronous>, transform_indices = @transform_3, window_bounds = array<i64: 16, 16>}, {pipeline_mode = #tpu.pipeline_mode<synchronous>, transform_indices = @transform_4, window_bounds = array<i64: 16, 1>}, {transform_indices = @transform_5, window_bounds = array<i64: 1, 16, 128>}]} {
    %c0 = arith.constant 0 : index
    %c0_0 = arith.constant 0 : index
    %c0_1 = arith.constant 0 : index
    %0 = vector.load %arg2[%c0, %c0_0, %c0_1] : memref<1x16x128xbf16, #tpu.memory_space<vmem>>, vector<1x16x128xbf16>
    %1 = vector.shape_cast %0 : vector<1x16x128xbf16> to vector<16x128xbf16>
    %c0_2 = arith.constant 0 : index
    %c0_3 = arith.constant 0 : index
    %2 = vector.load %arg3[%c0_2, %c0_3] : memref<16x16xbf16, #tpu.memory_space<vmem>>, vector<16x16xbf16>
    %c0_4 = arith.constant 0 : index
    %c0_5 = arith.constant 0 : index
    %3 = vector.load %arg4[%c0_4, %c0_5] : memref<16x1xf32, #tpu.memory_space<vmem>>, vector<16x1xf32>
    %cst = arith.constant dense<0.000000e+00> : vector<16x128xf32>
    %4 = tpu.matmul %2, %1, %cst {dimension_numbers = #tpu.dot_dimension_numbers<[1], [0], [0], [1], [0, 0, 1, 1], [], []>} : vector<16x16xbf16>, vector<16x128xbf16>, vector<16x128xf32> -> vector<16x128xf32>
    %5 = vector.broadcast %3 : vector<16x1xf32> to vector<16x128xf32>
    %6 = arith.addf %4, %5 : vector<16x128xf32>
    %7 = math.erf %6 : vector<16x128xf32>
    %cst_6 = arith.constant 1.000000e+00 : f32
    %8 = vector.broadcast %cst_6 : f32 to vector<16x128xf32>
    %9 = arith.addf %8, %7 : vector<16x128xf32>
    %10 = arith.mulf %6, %9 : vector<16x128xf32>
    %c0_7 = arith.constant 0 : index
    %c0_8 = arith.constant 0 : index
    %11 = vector.load %arg5[%c0_7, %c0_8] : memref<16x16xbf16, #tpu.memory_space<vmem>>, vector<16x16xbf16>
    %12 = arith.truncf %10 : vector<16x128xf32> to vector<16x128xbf16>
    %cst_9 = arith.constant dense<0.000000e+00> : vector<16x128xf32>
    %13 = tpu.matmul %11, %12, %cst_9 {dimension_numbers = #tpu.dot_dimension_numbers<[1], [0], [0], [1], [0, 0, 1, 1], [], []>} : vector<16x16xbf16>, vector<16x128xbf16>, vector<16x128xf32> -> vector<16x128xf32>
    %c0_10 = arith.constant 0 : index
    %c0_11 = arith.constant 0 : index
    %14 = vector.load %arg6[%c0_10, %c0_11] : memref<16x1xf32, #tpu.memory_space<vmem>>, vector<16x1xf32>
    %15 = vector.broadcast %14 : vector<16x1xf32> to vector<16x128xf32>
    %16 = arith.addf %13, %15 : vector<16x128xf32>
    %17 = arith.truncf %16 : vector<16x128xf32> to vector<16x128xbf16>
    %c0_12 = arith.constant 0 : index
    %c0_13 = arith.constant 0 : index
    %c0_14 = arith.constant 0 : index
    %18 = vector.load %arg7[%c0_12, %c0_13, %c0_14] : memref<1x16x128xbf16, #tpu.memory_space<vmem>>, vector<1x16x128xbf16>
    %19 = vector.shape_cast %18 : vector<1x16x128xbf16> to vector<16x128xbf16>
    %20 = vector.shape_cast %17 : vector<16x128xbf16> to vector<1x16x128xbf16>
    tpu.vector_store %arg7[%c0_12, %c0_13, %c0_14], %20 {strides = array<i32>} : memref<1x16x128xbf16, #tpu.memory_space<vmem>>, vector<1x16x128xbf16>,
    return
  }
  func.func @transform_0(%arg0: i32, %arg1: i32) -> (i32, i32, i32) {
    %c0_i32 = arith.constant 0 : i32
    %c0_i32_0 = arith.constant 0 : i32
    return %arg0, %c0_i32, %arg1 : i32, i32, i32
  }
  func.func @transform_1(%arg0: i32, %arg1: i32) -> (i32, i32) {
    %c0_i32 = arith.constant 0 : i32
    %c0_i32_0 = arith.constant 0 : i32
    %c0_i32_1 = arith.constant 0 : i32
    return %c0_i32, %c0_i32_0 : i32, i32
  }
  func.func @transform_2(%arg0: i32, %arg1: i32) -> (i32, i32) {
    %c0_i32 = arith.constant 0 : i32
    %c0_i32_0 = arith.constant 0 : i32
    %c0_i32_1 = arith.constant 0 : i32
    return %c0_i32, %c0_i32_0 : i32, i32
  }
  func.func @transform_3(%arg0: i32, %arg1: i32) -> (i32, i32) {
    %c0_i32 = arith.constant 0 : i32
    %c0_i32_0 = arith.constant 0 : i32
    %c0_i32_1 = arith.constant 0 : i32
    return %c0_i32, %c0_i32_0 : i32, i32
  }
  func.func @transform_4(%arg0: i32, %arg1: i32) -> (i32, i32) {
    %c0_i32 = arith.constant 0 : i32
    %c0_i32_0 = arith.constant 0 : i32
    %c0_i32_1 = arith.constant 0 : i32
    return %c0_i32, %c0_i32_0 : i32, i32
  }
  func.func @transform_5(%arg0: i32, %arg1: i32) -> (i32, i32, i32) {
    %c0_i32 = arith.constant 0 : i32
    %c0_i32_0 = arith.constant 0 : i32
    return %arg0, %c0_i32, %arg1 : i32, i32, i32
  }
}

</mosaic_0001>

<llo_original>
// kernel: ffn_forward.1
$region0: #{ffn_forward.1}
  #allocation0 [shape = 'u32[]', space=smem, size = 0x4, offset = 0x4, fixed_abs, tag = 'smem constant byte address 0x4 - core index']
  #allocation1 [shape = 'u32[144,128]{1,0:T(1,128)}', space=vmem, size = 0x12000, scoped, tag = 'internal scratch']
  #allocation2 [shape = 'f32[16,128]{1,0:T(8,128)}', space=vmem, size = 0x2000, scoped, tag = 'scratch operand']
  %s0 = inlined_call_operand.vmem [shape: bf16[2,16,256], index: 0, kind: input, shape index: {}]
  %s1 = inlined_call_operand.vmem [shape: bf16[16,16], index: 1, kind: input, shape index: {}]
  %s2 = inlined_call_operand.vmem [shape: f32[16,1], index: 2, kind: input, shape index: {}]
  %s3 = inlined_call_operand.vmem [shape: bf16[16,16], index: 3, kind: input, shape index: {}]
  %s4 = inlined_call_operand.vmem [shape: f32[16,1], index: 4, kind: input, shape index: {}]
  %s5 = inlined_call_operand.vmem [shape: bf16[2,16,256], index: 5, kind: output, shape index: {}]
  %s6 = sld [smem:[#allocation0]]
  $region131: #{ffn_forward.1} parent=0
    _
  %s8 = ssub.s32 1, %s6
  %s9 = scalar_select 0, %s8, %s6
  $region1: #{ffn_forward.1} parent=0
    #allocation3 [shape = 'u8[8192]{0}', space=vmem, size = 0x2000, scoped, tag = 'input window, operand 0']
    #allocation4 [shape = 'u8[8192]{0}', space=vmem, size = 0x2000, scoped, tag = 'output window, operand 0']
    loop: start=0, step=1, limit=6
    $region2: #{ffn_forward.1} parent=1 // loop_pre_header
      _
    $region3: #{ffn_forward.1} parent=1 // loop_header
      %s11 = sphi 0, %s15
      %p12 = scmp.ge.s32.totalorder %s11, 6
      %s18 = sphi 0, %s30
      %s19 = sphi 0, %s26
      %s20 = sphi 0, %s18
      %s21 = sphi 0, %s19
      %s22 = sphi 0, %s20
      %s23 = sphi 0, %s21
      %s35 = sphi 0, %s37
      %s38 = sphi 0, %s35
      %s39 = sphi 0, %s38
      %s55 = sphi 0, %s39
      %s59 = sphi 0, %s59
      %s61 = sphi 0, %s59
      %s62 = sphi 0, %s61
      %s76 = sphi 0, %s62
      %s80 = sphi 0, %s80
      %s82 = sphi 0, %s80
      %s83 = sphi 0, %s82
      %s97 = sphi 0, %s83
      %s101 = sphi 0, %s101
      %s103 = sphi 0, %s101
      %s104 = sphi 0, %s103
      %s118 = sphi 0, %s104
      %s122 = sphi 0, %s122
      %s124 = sphi 0, %s122
      %s125 = sphi 0, %s124
      %s139 = sphi 0, %s125
      %s147 = sphi 0, %s149
      %s150 = sphi 0, %s147
      %s151 = sphi 0, %s150
      %s167 = sphi 0, %s151
    $region4: #{ffn_forward.1} parent=1 // loop_header_branch
      %14 = sbr.rel (%p12) target = $region8
    $region5: #{ffn_forward.1} parent=1 // loop_body
      %s16 = ssub.s32 %s11, 1
      %s17 = ssub.s32 %s11, 2
      %s24 = sadd.s32 1, %s19
      %p25 = scmp.ge.s32.totalorder %s24, 2
      %s26 = scalar_select %p25, 0, %s24
      %s27 = sadd.s32 1, %s18
      %s28 = scalar_select %p25, %s27, %s18
      %p29 = scmp.ge.s32.totalorder %s28, 2
      %s30 = scalar_select %p29, 0, %s28
      %s31 = ssub.s32 %s18, %s30
      %s32 = ssub.s32 %s19, %s26
      %s33 = sor.u32 %s31, %s32
      %p34 = scmp.eq.s32.totalorder %s33, 0
      %s36 = sadd.s32 %s35, 1
      %s37 = scalar_select %p34, %s35, %s36
      %p40 = pneg %p34
      %p41 = scmp.eq.s32.totalorder %s11, 3
      %p42 = por %p40, %p41
      %p43 = scmp.ne.s32.totalorder %s35, %s38
      %p44 = scmp.eq.s32.totalorder %s11, 0
      %p45 = por %p43, %p44
      %p46 = scmp.ne.s32.totalorder %s35, %s38
      %p47 = scmp.eq.s32.totalorder %s16, 3
      %p48 = por %p46, %p47
      %p49 = scmp.ne.s32.totalorder %s38, %s39
      %p50 = scmp.eq.s32.totalorder %s16, 0
      %p51 = por %p49, %p50
      %p52 = scmp.ne.s32.totalorder %s38, %s39
      %p53 = scmp.eq.s32.totalorder %s17, 3
      %p54 = por %p52, %p53
      %p56 = scmp.ne.s32.totalorder %s39, %s55
      %p57 = scmp.eq.s32.totalorder %s17, 0
      %p58 = por %p56, %p57
      %s60 = sadd.s32 %s59, 1
      %p63 = scmp.eq.s32.totalorder %s11, 3
      %p64 = scmp.ne.s32.totalorder %s59, %s61
      %p65 = scmp.eq.s32.totalorder %s11, 0
      %p66 = por %p64, %p65
      %p67 = scmp.ne.s32.totalorder %s59, %s61
      %p68 = scmp.eq.s32.totalorder %s16, 3
      %p69 = por %p67, %p68
      %p70 = scmp.ne.s32.totalorder %s61, %s62
      %p71 = scmp.eq.s32.totalorder %s16, 0
      %p72 = por %p70, %p71
      %p73 = scmp.ne.s32.totalorder %s61, %s62
      %p74 = scmp.eq.s32.totalorder %s17, 3
      %p75 = por %p73, %p74
      %p77 = scmp.ne.s32.totalorder %s62, %s76
      %p78 = scmp.eq.s32.totalorder %s17, 0
      %p79 = por %p77, %p78
      %s81 = sadd.s32 %s80, 1
      %p84 = scmp.eq.s32.totalorder %s11, 3
      %p85 = scmp.ne.s32.totalorder %s80, %s82
      %p86 = scmp.eq.s32.totalorder %s11, 0
      %p87 = por %p85, %p86
      %p88 = scmp.ne.s32.totalorder %s80, %s82
      %p89 = scmp.eq.s32.totalorder %s16, 3
      %p90 = por %p88, %p89
      %p91 = scmp.ne.s32.totalorder %s82, %s83
      %p92 = scmp.eq.s32.totalorder %s16, 0
      %p93 = por %p91, %p92
      %p94 = scmp.ne.s32.totalorder %s82, %s83
      %p95 = scmp.eq.s32.totalorder %s17, 3
      %p96 = por %p94, %p95
      %p98 = scmp.ne.s32.totalorder %s83, %s97
      %p99 = scmp.eq.s32.totalorder %s17, 0
      %p100 = por %p98, %p99
      %s102 = sadd.s32 %s101, 1
      %p105 = scmp.eq.s32.totalorder %s11, 3
      %p106 = scmp.ne.s32.totalorder %s101, %s103
      %p107 = scmp.eq.s32.totalorder %s11, 0
      %p108 = por %p106, %p107
      %p109 = scmp.ne.s32.totalorder %s101, %s103
      %p110 = scmp.eq.s32.totalorder %s16, 3
      %p111 = por %p109, %p110
      %p112 = scmp.ne.s32.totalorder %s103, %s104
      %p113 = scmp.eq.s32.totalorder %s16, 0
      %p114 = por %p112, %p113
      %p115 = scmp.ne.s32.totalorder %s103, %s104
      %p116 = scmp.eq.s32.totalorder %s17, 3
      %p117 = por %p115, %p116
      %p119 = scmp.ne.s32.totalorder %s104, %s118
      %p120 = scmp.eq.s32.totalorder %s17, 0
      %p121 = por %p119, %p120
      %s123 = sadd.s32 %s122, 1
      %p126 = scmp.eq.s32.totalorder %s11, 3
      %p127 = scmp.ne.s32.totalorder %s122, %s124
      %p128 = scmp.eq.s32.totalorder %s11, 0
      %p129 = por %p127, %p128
      %p130 = scmp.ne.s32.totalorder %s122, %s124
      %p131 = scmp.eq.s32.totalorder %s16, 3
      %p132 = por %p130, %p131
      %p133 = scmp.ne.s32.totalorder %s124, %s125
      %p134 = scmp.eq.s32.totalorder %s16, 0
      %p135 = por %p133, %p134
      %p136 = scmp.ne.s32.totalorder %s124, %s125
      %p137 = scmp.eq.s32.totalorder %s17, 3
      %p138 = por %p136, %p137
      %p140 = scmp.ne.s32.totalorder %s125, %s139
      %p141 = scmp.eq.s32.totalorder %s17, 0
      %p142 = por %p140, %p141
      %s143 = ssub.s32 %s18, %s30
      %s144 = ssub.s32 %s19, %s26
      %s145 = sor.u32 %s143, %s144
      %p146 = scmp.eq.s32.totalorder %s145, 0
      %s148 = sadd.s32 %s147, 1
      %s149 = scalar_select %p146, %s147, %s148
      %p152 = pneg %p146
      %p153 = scmp.eq.s32.totalorder %s11, 3
      %p154 = por %p152, %p153
      %p155 = scmp.ne.s32.totalorder %s147, %s150
      %p156 = scmp.eq.s32.totalorder %s11, 0
      %p157 = por %p155, %p156
      %p158 = scmp.ne.s32.totalorder %s147, %s150
      %p159 = scmp.eq.s32.totalorder %s16, 3
      %p160 = por %p158, %p159
      %p161 = scmp.ne.s32.totalorder %s150, %s151
      %p162 = scmp.eq.s32.totalorder %s16, 0
      %p163 = por %p161, %p162
      %p164 = scmp.ne.s32.totalorder %s150, %s151
      %p165 = scmp.eq.s32.totalorder %s17, 3
      %p166 = por %p164, %p165
      %p168 = scmp.ne.s32.totalorder %s151, %s167
      %p169 = scmp.eq.s32.totalorder %s17, 0
      %p170 = por %p168, %p169
      %p171 = scmp.le.s32.totalorder 1, %s11
      %p172 = scmp.lt.s32.totalorder %s11, 5
      %p173 = pnand %p171, %p172
      %p174 = pneg %p173
      // Predicated region
      $region9: #{ffn_forward.1} parent=5 // pred_check
        _
      $region10: #{ffn_forward.1} parent=5 // pred_check_branch
        %176 = sbr.rel (%p173) target = $region12
      $region11: #{ffn_forward.1} parent=5 // pred_region
        %s177 = ssub.s32 %s11, 1
        // Predicated region
        $region13: #{ffn_forward.1} parent=11 // pred_check
          %p178 = pneg %p72
        $region14: #{ffn_forward.1} parent=11 // pred_check_branch
          %180 = sbr.rel (%p178) target = $region16
        $region15: #{ffn_forward.1} parent=11 // pred_region
          _
        $region16: #{ffn_forward.1} parent=11 // pred_fallthru
          _
        // Predicated region
        $region17: #{ffn_forward.1} parent=11 // pred_check
          %p181 = pneg %p93
        $region18: #{ffn_forward.1} parent=11 // pred_check_branch
          %183 = sbr.rel (%p181) target = $region20
        $region19: #{ffn_forward.1} parent=11 // pred_region
          _
        $region20: #{ffn_forward.1} parent=11 // pred_fallthru
          _
        // Predicated region
        $region21: #{ffn_forward.1} parent=11 // pred_check
          %p184 = pneg %p114
        $region22: #{ffn_forward.1} parent=11 // pred_check_branch
          %186 = sbr.rel (%p184) target = $region24
        $region23: #{ffn_forward.1} parent=11 // pred_region
          _
        $region24: #{ffn_forward.1} parent=11 // pred_fallthru
          _
        // Predicated region
        $region25: #{ffn_forward.1} parent=11 // pred_check
          %p187 = pneg %p135
        $region26: #{ffn_forward.1} parent=11 // pred_check_branch
          %189 = sbr.rel (%p187) target = $region28
        $region27: #{ffn_forward.1} parent=11 // pred_region
          _
        $region28: #{ffn_forward.1} parent=11 // pred_fallthru
          _
      $region12: #{ffn_forward.1} parent=5 // pred_fallthru
        _
      %p190 = scmp.lt.s32.totalorder %s11, 4
      // Predicated region
      $region29: #{ffn_forward.1} parent=5 // pred_check
        %p191 = pneg %p190
      $region30: #{ffn_forward.1} parent=5 // pred_check_branch
        %193 = sbr.rel (%p191) target = $region32
      $region31: #{ffn_forward.1} parent=5 // pred_region
        // Predicated region
        $region33: #{ffn_forward.1} parent=31 // pred_check
          %p194 = pneg %p45
        $region34: #{ffn_forward.1} parent=31 // pred_check_branch
          %196 = sbr.rel (%p194) target = $region36
        $region35: #{ffn_forward.1} parent=31 // pred_region
          %s197 = sand.u32 %s35, 1
          %s198 = sand.u32 %s35, 1
          %s199 = smul.addr %s198, 8
          %s200 = scalar_lea.vmem [#allocation3], %s199
          %s201 = smul.addr %s18, 4
          %s202 = sadd.s32 %s19, %s201
          %s203 = smul.addr %s202, 4
          %s204 = scalar_lea.vmem %s0, %s203
          // Predicated region
          $region37: #{ffn_forward.1} parent=35 // pred_check
            _
          $region38: #{ffn_forward.1} parent=35 // pred_check_branch
            %206 = sbr.rel (0) target = $region40
          $region39: #{ffn_forward.1} parent=35 // pred_region
            // Predicated region
            $region41: #{ffn_forward.1} parent=39 // pred_check
              _
            $region42: #{ffn_forward.1} parent=39 // pred_check_branch
              %208 = sbr.rel target = $region44
            $region43: #{ffn_forward.1} parent=39 // pred_region
              // Predicated region
              $region56: #{ffn_forward.1} parent=43 // pred_check
                _
              $region57: #{ffn_forward.1} parent=43 // pred_check_branch
                %225 = sbr.rel (0) target = $region59
              $region58: #{ffn_forward.1} parent=43 // pred_region
                loop: start=0, step=1, limit=1
                $region60: #{ffn_forward.1} parent=58 // loop_pre_header
                  _
                $region61: #{ffn_forward.1} parent=58 // loop_header
                  %s227 = sphi 0, %s231
                  %p228 = scmp.ge.s32.totalorder %s227, 1
                  %s232 = sphi %s204, %s204
                  %s233 = sphi %s200, %s200
                $region62: #{ffn_forward.1} parent=58 // loop_header_branch
                  %230 = sbr.rel (%p228) target = $region66
                $region63: #{ffn_forward.1} parent=58 // loop_body
                  _
                $region64: #{ffn_forward.1} parent=58 // loop_footer
                  %s231 = sadd.s32 1, %s227
                $region65: #{ffn_forward.1} parent=58 // loop_footer_branch
                  %226 = sbr.rel target = $region61
                $region66: #{ffn_forward.1} parent=58 // loop_exit
                  _
                loop: start=0, step=1, limit=1
                $region67: #{ffn_forward.1} parent=58 // loop_pre_header
                  _
                $region68: #{ffn_forward.1} parent=58 // loop_header
                  %s236 = sphi 0, %s240
                  %p237 = scmp.ge.s32.totalorder %s236, 1
                  %s241 = sphi %s204, %s204
                  %s242 = sphi %s200, %s200
                $region69: #{ffn_forward.1} parent=58 // loop_header_branch
                  %239 = sbr.rel (%p237) target = $region73
                $region70: #{ffn_forward.1} parent=58 // loop_body
                  %v243 = vld [vmem:[%s241] sm:$0xf]
                  %244 = vst [vmem:[%s242] sm:$0xf] %v243
                  %v245 = vld [vmem:[%s241 + $0x8] sm:$0xf]
                  %246 = vst [vmem:[%s242 + $0x4] sm:$0xf] %v245
                $region71: #{ffn_forward.1} parent=58 // loop_footer
                  %s240 = sadd.s32 1, %s236
                $region72: #{ffn_forward.1} parent=58 // loop_footer_branch
                  %235 = sbr.rel target = $region68
                $region73: #{ffn_forward.1} parent=58 // loop_exit
                  _
              $region59: #{ffn_forward.1} parent=43 // pred_fallthru
                _
            $region44: #{ffn_forward.1} parent=39 // pred_fallthru
              _
            // Predicated region
            $region45: #{ffn_forward.1} parent=39 // pred_check
              _
            $region46: #{ffn_forward.1} parent=39 // pred_check_branch
              %210 = sbr.rel (0) target = $region48
            $region47: #{ffn_forward.1} parent=39 // pred_region
              loop: start=0, step=1, limit=1
              $region49: #{ffn_forward.1} parent=47 // loop_pre_header
                _
              $region50: #{ffn_forward.1} parent=47 // loop_header
                %s213 = sphi 0, %s217
                %p214 = scmp.ge.s32.totalorder %s213, 1
                %s218 = sphi %s204, %s204
                %s219 = sphi %s200, %s200
              $region51: #{ffn_forward.1} parent=47 // loop_header_branch
                %216 = sbr.rel (%p214) target = $region55
              $region52: #{ffn_forward.1} parent=47 // loop_body
                %v220 = vld [vmem:[%s218] sm:$0xf]
                %221 = vst [vmem:[%s219] sm:$0xf] %v220
                %v222 = vld [vmem:[%s218 + $0x8] sm:$0xf]
                %223 = vst [vmem:[%s219 + $0x4] sm:$0xf] %v222
              $region53: #{ffn_forward.1} parent=47 // loop_footer
                %s217 = sadd.s32 1, %s213
              $region54: #{ffn_forward.1} parent=47 // loop_footer_branch
                %212 = sbr.rel target = $region50
              $region55: #{ffn_forward.1} parent=47 // loop_exit
                _
            $region48: #{ffn_forward.1} parent=39 // pred_fallthru
              _
          $region40: #{ffn_forward.1} parent=35 // pred_fallthru
            _
          %247 = vnop
        $region36: #{ffn_forward.1} parent=31 // pred_fallthru
          _
      $region32: #{ffn_forward.1} parent=5 // pred_fallthru
        _
      %p248 = scmp.le.s32.totalorder 1, %s11
      %p249 = scmp.lt.s32.totalorder %s11, 5
      %p250 = pnand %p248, %p249
      %p251 = pneg %p250
      // Predicated region
      $region74: #{ffn_forward.1} parent=5 // pred_check
        _
      $region75: #{ffn_forward.1} parent=5 // pred_check_branch
        %253 = sbr.rel (%p250) target = $region77
      $region76: #{ffn_forward.1} parent=5 // pred_region
        %s254 = ssub.s32 %s11, 1
        %s255 = sand.u32 %s38, 1
        %s256 = sand.u32 %s38, 1
        %s257 = smul.addr %s256, 8
        %s258 = scalar_lea.vmem [#allocation3], %s257
        // Predicated region
        $region78: #{ffn_forward.1} parent=76 // pred_check
          %p259 = pneg %p51
        $region79: #{ffn_forward.1} parent=76 // pred_check_branch
          %261 = sbr.rel (%p259) target = $region81
        $region80: #{ffn_forward.1} parent=76 // pred_region
          _
        $region81: #{ffn_forward.1} parent=76 // pred_fallthru
          _
        %s262 = sand.u32 %s38, 1
        %s263 = sand.u32 %s38, 1
        %s264 = smul.addr %s263, 8
        %s265 = scalar_lea.vmem [#allocation3], %s264
        %p266 = pneg %p51
        %p267 = pneg %p48
        %p268 = pneg %p72
        %p269 = pneg %p69
        %p270 = pneg %p93
        %p271 = pneg %p90
        %p272 = pneg %p114
        %p273 = pneg %p111
        %p274 = pneg %p135
        %p275 = pneg %p132
        %p276 = pneg %p163
        %p277 = pneg %p160
        %s278 = sand.u32 %s150, 1
        %s279 = sand.u32 %s150, 1
        %s280 = smul.addr %s279, 8
        %s281 = scalar_lea.vmem [#allocation4], %s280
        %v283 = vld [vmem:[%s258] sm:$0xf]
        %v284 = vld [vmem:[%s258 + $0x4] sm:$0xf]
        %v285 = vld [vmem:[%s1] sm:$0xf]
        %v286 = vld [vmem:[%s1 + $0x4] sm:$0xf]
        %v287 = vld [vmem:[%s2] sm:$0xff]
        %v288 = vld [vmem:[%s2 + $0x8] sm:$0xff]
        %290 = vset.pattern.permute.xlu0 0
        %291 = vperm.xlu0 %290, %v287
        %v292 = vpop.permute.xlu0 %291
        %295 = vset.pattern.permute.xlu0 0
        %296 = vperm.xlu0 %295, %v288
        %v297 = vpop.permute.xlu0 %296
        %v301 = vunpack.c.l.b16 %v285
        %v302 = vunpack.c.l.b16 %v286
        %v303 = vpack.c.b16 %v302, %v301
        %v306 = vunpack.c.l.b16 %v283
        %v307 = vunpack.c.l.b16 %v284
        %v308 = vpack.c.b16 %v307, %v306
        %vm310 = vcmask 130048
        %v312 = vsel %vm310, %v303, 0
        %314 = vmatprep.subr.bf16.mxu0 0
        %315 = vmatpush1.bf16.msra.mxu0 %v308
        %316 = vmatprep.subr.bf16.mxu0 0
        %317 = vmatpush1.bf16.msra.mxu0 0
        %318 = vmatprep.subr.bf16.mxu0 0
        %319 = vmatpush1.bf16.msra.mxu0 0
        %320 = vmatprep.subr.bf16.mxu0 0
        %321 = vmatpush1.bf16.msra.mxu0 0
        %322 = vmatprep.subr.bf16.mxu0 0
        %323 = vmatpush1.bf16.msra.mxu0 0
        %324 = vmatprep.subr.bf16.mxu0 0
        %325 = vmatpush1.bf16.msra.mxu0 0
        %326 = vmatprep.subr.bf16.mxu0 0
        %327 = vmatpush1.bf16.msra.mxu0 0
        %328 = vmatprep.subr.bf16.mxu0 0
        %329 = vmatpush1.bf16.msra.mxu0 0
        %330 = vmatprep.subr.bf16.mxu0 0
        %331 = vmatpush1.bf16.msra.mxu0 0
        %332 = vmatprep.subr.bf16.mxu0 0
        %333 = vmatpush1.bf16.msra.mxu0 0
        %334 = vmatprep.subr.bf16.mxu0 0
        %335 = vmatpush1.bf16.msra.mxu0 0
        %336 = vmatprep.subr.bf16.mxu0 0
        %337 = vmatpush1.bf16.msra.mxu0 0
        %338 = vmatprep.subr.bf16.mxu0 0
        %339 = vmatpush1.bf16.msra.mxu0 0
        %340 = vmatprep.subr.bf16.mxu0 0
        %341 = vmatpush1.bf16.msra.mxu0 0
        %342 = vmatprep.subr.bf16.mxu0 0
        %343 = vmatpush1.bf16.msra.mxu0 0
        %344 = vmatprep.subr.bf16.mxu0 0
        %345 = vmatpush1.bf16.msra.mxu0 0
        %346 = vmatprep.mubr.bf16.mxu0 0
        %347 = vmatmul.mubr.bf16.gmra.mrb[0].mxu0 %v312
        %v348 = vpop.f32.mrb[0].mxu0
        %v349 = vadd.f32 %v292, %v348
        %v350 = vpop.f32.mrb[0].mxu0
        %v351 = vpop.f32.mrb[0].mxu0
        %v352 = vadd.f32 %v297, %v351
        %v353 = vpop.f32.mrb[0].mxu0
        %354 = vdwg.mxu0
        %v355 = verf.f32.pop %v349
        %v356 = verf.f32.pop %v352
        %v357 = vadd.f32 %v355, 1.0
        %v358 = vadd.f32 %v356, 1.0
        %v359 = vmul.f32 %v349, %v357
        %v360 = vmul.f32 %v352, %v358
        %v361 = vld [vmem:[%s3] sm:$0xf]
        %v362 = vld [vmem:[%s3 + $0x4] sm:$0xf]
        %v363 = vpack.c.bf16 %v360, %v359
        %v364 = vld [vmem:[%s4] sm:$0xff]
        %v365 = vld [vmem:[%s4 + $0x8] sm:$0xff]
        %367 = vset.pattern.permute.xlu0 0
        %368 = vperm.xlu0 %367, %v364
        %v369 = vpop.permute.xlu0 %368
        %372 = vset.pattern.permute.xlu0 0
        %373 = vperm.xlu0 %372, %v365
        %v374 = vpop.permute.xlu0 %373
        %v378 = vunpack.c.l.b16 %v361
        %v379 = vunpack.c.l.b16 %v362
        %v380 = vpack.c.b16 %v379, %v378
        %v382 = vsel %vm310, %v380, 0
        %384 = vmatprep.subr.bf16.mxu0 0
        %385 = vmatpush1.bf16.msra.mxu0 %v363
        %386 = vmatprep.subr.bf16.mxu0 0
        %387 = vmatpush1.bf16.msra.mxu0 0
        %388 = vmatprep.subr.bf16.mxu0 0
        %389 = vmatpush1.bf16.msra.mxu0 0
        %390 = vmatprep.subr.bf16.mxu0 0
        %391 = vmatpush1.bf16.msra.mxu0 0
        %392 = vmatprep.subr.bf16.mxu0 0
        %393 = vmatpush1.bf16.msra.mxu0 0
        %394 = vmatprep.subr.bf16.mxu0 0
        %395 = vmatpush1.bf16.msra.mxu0 0
        %396 = vmatprep.subr.bf16.mxu0 0
        %397 = vmatpush1.bf16.msra.mxu0 0
        %398 = vmatprep.subr.bf16.mxu0 0
        %399 = vmatpush1.bf16.msra.mxu0 0
        %400 = vmatprep.subr.bf16.mxu0 0
        %401 = vmatpush1.bf16.msra.mxu0 0
        %402 = vmatprep.subr.bf16.mxu0 0
        %403 = vmatpush1.bf16.msra.mxu0 0
        %404 = vmatprep.subr.bf16.mxu0 0
        %405 = vmatpush1.bf16.msra.mxu0 0
        %406 = vmatprep.subr.bf16.mxu0 0
        %407 = vmatpush1.bf16.msra.mxu0 0
        %408 = vmatprep.subr.bf16.mxu0 0
        %409 = vmatpush1.bf16.msra.mxu0 0
        %410 = vmatprep.subr.bf16.mxu0 0
        %411 = vmatpush1.bf16.msra.mxu0 0
        %412 = vmatprep.subr.bf16.mxu0 0
        %413 = vmatpush1.bf16.msra.mxu0 0
        %414 = vmatprep.subr.bf16.mxu0 0
        %415 = vmatpush1.bf16.msra.mxu0 0
        %416 = vmatprep.mubr.bf16.mxu0 0
        %417 = vmatmul.mubr.bf16.gmra.mrb[0].mxu0 %v382
        %v418 = vpop.f32.mrb[0].mxu0
        %v419 = vadd.f32 %v369, %v418
        %v420 = vpop.f32.mrb[0].mxu0
        %v421 = vpop.f32.mrb[0].mxu0
        %v422 = vadd.f32 %v374, %v421
        %v423 = vpop.f32.mrb[0].mxu0
        %424 = vdwg.mxu0
        %v425 = vpack.c.bf16 %v422, %v419
        %v427 = vunpack.c.l.b16 %v425
        %v428 = vunpack.c.h.b16 %v425
        %v429 = vpack.c.b16 %v427, %v427
        %v430 = vpack.c.b16 %v428, %v428
        %433 = vst [vmem:[%s281] sm:$0xf] %v429
        %434 = vst [vmem:[%s281 + $0x4] sm:$0xf] %v430
        %s435 = sand.u32 %s150, 1
        %s436 = sand.u32 %s150, 1
        %s437 = smul.addr %s436, 8
        %s438 = scalar_lea.vmem [#allocation4], %s437
        // Predicated region
        $region82: #{ffn_forward.1} parent=76 // pred_check
          %p439 = pneg %p160
        $region83: #{ffn_forward.1} parent=76 // pred_check_branch
          %441 = sbr.rel (%p439) target = $region85
        $region84: #{ffn_forward.1} parent=76 // pred_region
          %s442 = smul.addr %s20, 4
          %s443 = sadd.s32 %s21, %s442
          %s444 = smul.addr %s443, 4
          %s445 = scalar_lea.vmem %s5, %s444
          // Predicated region
          $region86: #{ffn_forward.1} parent=84 // pred_check
            _
          $region87: #{ffn_forward.1} parent=84 // pred_check_branch
            %447 = sbr.rel (0) target = $region89
          $region88: #{ffn_forward.1} parent=84 // pred_region
            // Predicated region
            $region90: #{ffn_forward.1} parent=88 // pred_check
              _
            $region91: #{ffn_forward.1} parent=88 // pred_check_branch
              %449 = sbr.rel target = $region93
            $region92: #{ffn_forward.1} parent=88 // pred_region
              // Predicated region
              $region105: #{ffn_forward.1} parent=92 // pred_check
                _
              $region106: #{ffn_forward.1} parent=92 // pred_check_branch
                %466 = sbr.rel (0) target = $region108
              $region107: #{ffn_forward.1} parent=92 // pred_region
                loop: start=0, step=1, limit=1
                $region109: #{ffn_forward.1} parent=107 // loop_pre_header
                  _
                $region110: #{ffn_forward.1} parent=107 // loop_header
                  %s468 = sphi 0, %s472
                  %p469 = scmp.ge.s32.totalorder %s468, 1
                  %s473 = sphi %s438, %s438
                  %s474 = sphi %s445, %s445
                $region111: #{ffn_forward.1} parent=107 // loop_header_branch
                  %471 = sbr.rel (%p469) target = $region115
                $region112: #{ffn_forward.1} parent=107 // loop_body
                  _
                $region113: #{ffn_forward.1} parent=107 // loop_footer
                  %s472 = sadd.s32 1, %s468
                $region114: #{ffn_forward.1} parent=107 // loop_footer_branch
                  %467 = sbr.rel target = $region110
                $region115: #{ffn_forward.1} parent=107 // loop_exit
                  _
                loop: start=0, step=1, limit=1
                $region116: #{ffn_forward.1} parent=107 // loop_pre_header
                  _
                $region117: #{ffn_forward.1} parent=107 // loop_header
                  %s477 = sphi 0, %s481
                  %p478 = scmp.ge.s32.totalorder %s477, 1
                  %s482 = sphi %s438, %s438
                  %s483 = sphi %s445, %s445
                $region118: #{ffn_forward.1} parent=107 // loop_header_branch
                  %480 = sbr.rel (%p478) target = $region122
                $region119: #{ffn_forward.1} parent=107 // loop_body
                  %v484 = vld [vmem:[%s482] sm:$0xf]
                  %485 = vst [vmem:[%s483] sm:$0xf] %v484
                  %v486 = vld [vmem:[%s482 + $0x4] sm:$0xf]
                  %487 = vst [vmem:[%s483 + $0x8] sm:$0xf] %v486
                $region120: #{ffn_forward.1} parent=107 // loop_footer
                  %s481 = sadd.s32 1, %s477
                $region121: #{ffn_forward.1} parent=107 // loop_footer_branch
                  %476 = sbr.rel target = $region117
                $region122: #{ffn_forward.1} parent=107 // loop_exit
                  _
              $region108: #{ffn_forward.1} parent=92 // pred_fallthru
                _
            $region93: #{ffn_forward.1} parent=88 // pred_fallthru
              _
            // Predicated region
            $region94: #{ffn_forward.1} parent=88 // pred_check
              _
            $region95: #{ffn_forward.1} parent=88 // pred_check_branch
              %451 = sbr.rel (0) target = $region97
            $region96: #{ffn_forward.1} parent=88 // pred_region
              loop: start=0, step=1, limit=1
              $region98: #{ffn_forward.1} parent=96 // loop_pre_header
                _
              $region99: #{ffn_forward.1} parent=96 // loop_header
                %s454 = sphi 0, %s458
                %p455 = scmp.ge.s32.totalorder %s454, 1
                %s459 = sphi %s438, %s438
                %s460 = sphi %s445, %s445
              $region100: #{ffn_forward.1} parent=96 // loop_header_branch
                %457 = sbr.rel (%p455) target = $region104
              $region101: #{ffn_forward.1} parent=96 // loop_body
                %v461 = vld [vmem:[%s459] sm:$0xf]
                %462 = vst [vmem:[%s460] sm:$0xf] %v461
                %v463 = vld [vmem:[%s459 + $0x4] sm:$0xf]
                %464 = vst [vmem:[%s460 + $0x8] sm:$0xf] %v463
              $region102: #{ffn_forward.1} parent=96 // loop_footer
                %s458 = sadd.s32 1, %s454
              $region103: #{ffn_forward.1} parent=96 // loop_footer_branch
                %453 = sbr.rel target = $region99
              $region104: #{ffn_forward.1} parent=96 // loop_exit
                _
            $region97: #{ffn_forward.1} parent=88 // pred_fallthru
              _
          $region89: #{ffn_forward.1} parent=84 // pred_fallthru
            _
          %488 = vnop
        $region85: #{ffn_forward.1} parent=76 // pred_fallthru
          _
      $region77: #{ffn_forward.1} parent=5 // pred_fallthru
        _
      %p489 = scmp.le.s32.totalorder 2, %s11
      // Predicated region
      $region123: #{ffn_forward.1} parent=5 // pred_check
        %p490 = pneg %p489
      $region124: #{ffn_forward.1} parent=5 // pred_check_branch
        %492 = sbr.rel (%p490) target = $region126
      $region125: #{ffn_forward.1} parent=5 // pred_region
        %s493 = ssub.s32 %s11, 2
        // Predicated region
        $region127: #{ffn_forward.1} parent=125 // pred_check
          %p494 = pneg %p166
        $region128: #{ffn_forward.1} parent=125 // pred_check_branch
          %496 = sbr.rel (%p494) target = $region130
        $region129: #{ffn_forward.1} parent=125 // pred_region
          %s497 = sand.u32 %s151, 1
          %s498 = sand.u32 %s151, 1
          %s499 = smul.addr %s498, 8
          %s500 = scalar_lea.vmem [#allocation4], %s499
        $region130: #{ffn_forward.1} parent=125 // pred_fallthru
          _
      $region126: #{ffn_forward.1} parent=5 // pred_fallthru
        _
    $region6: #{ffn_forward.1} parent=1 // loop_footer
      %s15 = sadd.s32 1, %s11
    $region7: #{ffn_forward.1} parent=1 // loop_footer_branch
      %10 = sbr.rel target = $region3
    $region8: #{ffn_forward.1} parent=1 // loop_exit
      _

</llo_original>
